<compile_context>
chip_gen: v5e
topology: v5e:2x2
jax: 0.10.0
libtpu: 0.0.40
codegen_flags: <defaults>
</compile_context>

<pallas_src>
import jax
import jax.numpy as jnp
from jax.experimental import pallas as pl
from jax.experimental.pallas import tpu as pltpu

LANE = 128
SUBLANE = 8


def _round_up(x, m):
    return ((x + m - 1) // m) * m


def _vmem_plan():
    """Per-generation scoped-VMEM limit and working-set budget."""
    try:
        cap = pltpu.get_tpu_info().vmem_capacity_bytes
    except Exception:
        cap = 64 * 1024 * 1024
    if cap >= 100 * 1024 * 1024:           # v5e / v6e: 128 MiB physical
        limit = 100 * 1024 * 1024
    else:                                   # v7x: 64 MiB physical per TC
        limit = max(min(48 * 1024 * 1024, cap - 16 * 1024 * 1024), 16 * 1024 * 1024)
    budget = max(limit - 12 * 1024 * 1024, 8 * 1024 * 1024)   # headroom for compiler scratch
    return limit, budget


def _choose_tiling(n, f_out_max, budget):
    """Pick row tile TM (maximize first: amortizes per-step overhead and minimizes XW
    re-streaming) and contraction tile TK (bounds VMEM independent of N)."""
    n8 = _round_up(max(n, 1), SUBLANE)
    tm_cands = [t for t in (1024, 512, 256, 128, 64, 32, 16, 8) if t <= n8] or [SUBLANE]

    def footprint(tm, tk):
        a = 2 * tm * tk                      # int8 A tile, double buffered
        xw = 2 * tk * f_out_max * 2          # bf16 XW tile, double buffered
        o = 2 * tm * f_out_max * 2           # bf16 output tile, double buffered
        acc = tm * f_out_max * 4             # f32 accumulator scratch
        misc = 4 * tm * 4 + 4 * f_out_max * 4
        return a + xw + o + acc + misc

    tm = next((t for t in tm_cands if footprint(t, t) <= budget), tm_cands[-1])
    n_pad_tm = _round_up(n, tm)
    tk = tm
    for c in (8, 4, 2):
        cand = tm * c
        if cand <= n_pad_tm and footprint(tm, cand) <= budget:
            tk = cand
            break
    n_pad = _round_up(n, tk)
    # (8,128) rule on the streamed A tile: last dim must be 128-divisible or full-extent.
    if tk % LANE != 0 and tk != n_pad:
        tk = n_pad
    return tm, tk, n_pad


# ---------------------------------------------------------------------------
# Pallas kernels
# ---------------------------------------------------------------------------
def _xw_kernel(x_ref, w_ref, dinv_ref, o_ref):
    # (TM, Fin) @ (Fin, Fout) on the MXU, f32 accumulation, fold the right D^{-1/2}
    # (row scale) into the epilogue, store bf16 lane-dense.
    xw = jnp.dot(x_ref[...], w_ref[...], preferred_element_type=jnp.float32)
    o_ref[...] = (xw * dinv_ref[...]).astype(o_ref.dtype)


def _agg_kernel(a_ref, xw_ref, dinv_ref, b_ref, o_ref, acc_ref):
    # K-tiled (TM, TK) @ (TK, Fout): int8 structure tile cast to bf16 in-register,
    # f32 accumulator scratch; finalize applies the left D^{-1/2}, bias and ReLU.
    k = pl.program_id(1)

    @pl.when(k == 0)
    def _():
        acc_ref[...] = jnp.zeros_like(acc_ref)

    acc_ref[...] += jnp.dot(a_ref[...].astype(jnp.bfloat16), xw_ref[...],
                            preferred_element_type=jnp.float32)

    @pl.when(k == pl.num_programs(1) - 1)
    def _():
        h = acc_ref[...] * dinv_ref[...] + b_ref[...]
        o_ref[...] = jnp.maximum(h, 0.0).astype(o_ref.dtype)


def gcn_layer(adj, x, w, b, dinv, *, tm, tk, vmem_limit):
    """One GCNConv + ReLU: relu(D^{-1/2} B D^{-1/2} (X @ W) + b)."""
    n_pad = adj.shape[0]
    f_in = x.shape[1]
    f_out = w.shape[1]

    cp1 = pltpu.CompilerParams(dimension_semantics=("parallel",),
                               vmem_limit_bytes=vmem_limit)
    cp2 = pltpu.CompilerParams(dimension_semantics=("parallel", "arbitrary"),
                               vmem_limit_bytes=vmem_limit)

    # ---- stage 1: XW' = (X @ W) * d^{-1/2}, computed once ----
    xw = pl.pallas_call(
        _xw_kernel,
        out_shape=jax.ShapeDtypeStruct((n_pad, f_out), jnp.bfloat16),
        grid_spec=pltpu.PrefetchScalarGridSpec(
            num_scalar_prefetch=0,
            grid=(n_pad // tm,),
            in_specs=[
                pl.BlockSpec((tm, f_in), lambda i: (i, 0)),
                pl.BlockSpec((f_in, f_out), lambda i: (0, 0)),
                pl.BlockSpec((tm, 1), lambda i: (i, 0)),
            ],
            out_specs=pl.BlockSpec((tm, f_out), lambda i: (i, 0)),
        ),
        compiler_params=cp1,
        cost_estimate=pl.CostEstimate(
            flops=2 * n_pad * f_in * f_out,
            transcendentals=0,
            bytes_accessed=2 * n_pad * f_in + 2 * f_in * f_out + 2 * n_pad * f_out,
        ),
    )(x, w, dinv)

    # ---- stage 2: relu(d^{-1/2} * (B @ XW') + b), K-tiled, int8 A stream ----
    out = pl.pallas_call(
        _agg_kernel,
        out_shape=jax.ShapeDtypeStruct((n_pad, f_out), jnp.bfloat16),
        grid_spec=pltpu.PrefetchScalarGridSpec(
            num_scalar_prefetch=0,
            grid=(n_pad // tm, n_pad // tk),
            in_specs=[
                pl.BlockSpec((tm, tk), lambda i, k: (i, k)),        # int8 A tile (streamed)
                pl.BlockSpec((tk, f_out), lambda i, k: (k, 0)),     # scaled XW tile
                pl.BlockSpec((tm, 1), lambda i, k: (i, 0)),         # d^{-1/2} rows
                pl.BlockSpec((1, f_out), lambda i, k: (0, 0)),      # bias (constant)
            ],
            out_specs=pl.BlockSpec((tm, f_out), lambda i, k: (i, 0)),
            scratch_shapes=[pltpu.VMEM((tm, f_out), jnp.float32)],
        ),
        compiler_params=cp2,
        cost_estimate=pl.CostEstimate(
            flops=2 * n_pad * n_pad * f_out,
            transcendentals=0,
            bytes_accessed=(n_pad * n_pad                                  # int8 A
                            + (n_pad // tm) * n_pad * f_out * 2            # XW re-streams
                            + n_pad * f_out * 2 + 8 * n_pad + 4 * f_out),
        ),
    )(adj, xw, dinv, b)
    return out


# ---------------------------------------------------------------------------
# Glue: int8 adjacency structure + D^{-1/2} (plain JAX, hoistable across forwards)
# ---------------------------------------------------------------------------
def build_graph_structure(edge_index, num_nodes, n_pad):
    """0/1 structure B (int8, with self loops, aggregation at edge targets to match
    PyG's source_to_target flow) and D^{-1/2} from B's row sums."""
    src, dst = edge_index[0], edge_index[1]
    loop = jnp.arange(num_nodes, dtype=edge_index.dtype)
    rows = jnp.concatenate([dst, loop])     # aggregate at the target node
    cols = jnp.concatenate([src, loop])
    adj = jnp.zeros((n_pad, n_pad), jnp.int8).at[rows, cols].set(jnp.int8(1))
    deg = jnp.sum(adj, axis=1, dtype=jnp.float32)
    d_inv_sqrt = jnp.where(deg > 0.0, jax.lax.rsqrt(jnp.maximum(deg, 1.0)), 0.0)
    return adj, d_inv_sqrt.reshape(n_pad, 1).astype(jnp.float32)


# ---------------------------------------------------------------------------
# Encoder wrapper (mirror of the PyTorch Encoder, skip=False)
# ---------------------------------------------------------------------------
class EncoderPallas:
    """k GCNConv layers, each followed by ReLU.  Widths: in -> 2*out -> ... -> out
    (output feature dims padded to the 128 lane width; first-layer input unpadded)."""

    def __init__(self, in_channels, out_channels, k=2, key=None):
        assert k >= 2
        self.k = k
        self.in_channels = in_channels
        self.out_channels = out_channels
        self.dims = [in_channels] + [2 * out_channels] * (k - 1) + [out_channels]
        self.dims_pad = [in_channels] + [_round_up(d, LANE) for d in self.dims[1:]]
        key = jax.random.PRNGKey(42) if key is None else key
        self.weights, self.biases = [], []
        for i in range(k):
            key, wk = jax.random.split(key)
            fan_in, fan_out = self.dims[i], self.dims[i + 1]
            limit = (6.0 / (fan_in + fan_out)) ** 0.5   # glorot-uniform as in PyG GCNConv
            w = jax.random.uniform(wk, (fan_in, fan_out), jnp.float32, -limit, limit)
            w_pad = (jnp.zeros((self.dims_pad[i], self.dims_pad[i + 1]), jnp.float32)
                     .at[:fan_in, :fan_out].set(w))
            self.weights.append(w_pad.astype(jnp.bfloat16))
            self.biases.append(jnp.zeros((1, self.dims_pad[i + 1]), jnp.float32))  # PyG zero-init

    def prepare_graph(self, edge_index, num_nodes):
        """Precompute (and reuse across forward passes) the streamed graph data."""
        vmem_limit, budget = _vmem_plan()
        f_out_max = max(self.dims_pad[1:])
        tm, tk, n_pad = _choose_tiling(num_nodes, f_out_max, budget)
        adj, dinv = build_graph_structure(edge_index, num_nodes, n_pad)
        return dict(adj=adj, dinv=dinv, tm=tm, tk=tk, n_pad=n_pad, vmem_limit=vmem_limit)

    def __call__(self, x, edge_index, graph=None):
        n = x.shape[0]
        if graph is None:
            graph = self.prepare_graph(edge_index, n)
        adj, dinv = graph["adj"], graph["dinv"]
        tm, tk, n_pad = graph["tm"], graph["tk"], graph["n_pad"]
        vmem_limit = graph["vmem_limit"]
        h = (jnp.zeros((n_pad, self.dims_pad[0]), jnp.float32)
             .at[:n, : x.shape[1]].set(x)
             .astype(jnp.bfloat16))
        for i in range(self.k):
            h = gcn_layer(adj, h, self.weights[i], self.biases[i], dinv,
                          tm=tm, tk=tk, vmem_limit=vmem_limit)
        return h[:n, : self.out_channels].astype(jnp.float32)


# ---------------------------------------------------------------------------
# Pure-JAX reference (mirrors the kernel's bf16 casts) for a sanity check
# ---------------------------------------------------------------------------
def _reference_forward(encoder, x, graph):
    n = x.shape[0]
    n_pad = graph["n_pad"]
    a = graph["adj"].astype(jnp.float32)
    d = graph["dinv"]
    h = (jnp.zeros((n_pad, encoder.dims_pad[0]), jnp.float32)
         .at[:n, : x.shape[1]].set(x)
         .astype(jnp.bfloat16).astype(jnp.float32))
    for i in range(encoder.k):
        w = encoder.weights[i].astype(jnp.float32)
        xw = ((h @ w) * d).astype(jnp.bfloat16).astype(jnp.float32)
        out = jnp.maximum((a @ xw) * d + encoder.biases[i], 0.0)
        h = out.astype(jnp.bfloat16).astype(jnp.float32)
    return h[:n, : encoder.out_channels]


if __name__ == "__main__":
    key = jax.random.PRNGKey(0)
    num_nodes = 64
    in_channels = 32
    out_channels = 16
    num_edges = 128

    kx, ke1, ke2, kp = jax.random.split(key, 4)
    x = jax.random.normal(kx, (num_nodes, in_channels), jnp.float32)
    src = jax.random.randint(ke1, (num_edges,), 0, num_nodes, jnp.int32)
    dst = jax.random.randint(ke2, (num_edges,), 0, num_nodes, jnp.int32)
    edge_index = jnp.stack([src, dst], axis=0)  # [2, E]

    encoder = EncoderPallas(in_channels, out_channels, k=2, key=kp)
    graph = encoder.prepare_graph(edge_index, num_nodes)   # hoisted: reusable across forwards
    out = jax.block_until_ready(encoder(x, edge_index, graph=graph))

    assert out.shape == (num_nodes, out_channels)
    assert bool(jnp.all(jnp.isfinite(out)))

    ref = jax.block_until_ready(_reference_forward(encoder, x, graph))
    assert bool(jnp.allclose(out, ref, atol=5e-2, rtol=5e-2)), (
        f"max abs err {float(jnp.max(jnp.abs(out - ref)))}"
    )
    print("KERNEL_OK")
</pallas_src>

<mosaic_0001>
module attributes {stable_mosaic.version = 11 : i64} {
  func.func @_xw_kernel(%arg0: i32, %arg1: memref<64x32xbf16, #tpu.memory_space<vmem>>, %arg2: memref<32x128xbf16, #tpu.memory_space<vmem>>, %arg3: memref<64x1xf32, #tpu.memory_space<vmem>>, %arg4: memref<64x128xbf16, #tpu.memory_space<vmem>>) attributes {dimension_semantics = [#tpu.dimension_semantics<parallel>], iteration_bounds = array<i64: 1>, scalar_prefetch = 0 : i64, scratch_operands = 0 : i64, tpu.core_type = #tpu.core_type<tc>, window_params = [{transform_indices = @transform_0, window_bounds = array<i64: 64, 32>}, {pipeline_mode = #tpu.pipeline_mode<synchronous>, transform_indices = @transform_1, window_bounds = array<i64: 32, 128>}, {transform_indices = @transform_2, window_bounds = array<i64: 64, 1>}, {transform_indices = @transform_3, window_bounds = array<i64: 64, 128>}]} {
    %c0 = arith.constant 0 : index
    %c0_0 = arith.constant 0 : index
    %0 = vector.load %arg1[%c0, %c0_0] : memref<64x32xbf16, #tpu.memory_space<vmem>>, vector<64x32xbf16>
    %c0_1 = arith.constant 0 : index
    %c0_2 = arith.constant 0 : index
    %1 = vector.load %arg2[%c0_1, %c0_2] : memref<32x128xbf16, #tpu.memory_space<vmem>>, vector<32x128xbf16>
    %cst = arith.constant dense<0.000000e+00> : vector<64x128xf32>
    %2 = tpu.matmul %0, %1, %cst {dimension_numbers = #tpu.dot_dimension_numbers<[1], [0], [0], [1], [0, 0, 1, 1], [], []>} : vector<64x32xbf16>, vector<32x128xbf16>, vector<64x128xf32> -> vector<64x128xf32>
    %c0_3 = arith.constant 0 : index
    %c0_4 = arith.constant 0 : index
    %3 = vector.load %arg3[%c0_3, %c0_4] : memref<64x1xf32, #tpu.memory_space<vmem>>, vector<64x1xf32>
    %4 = vector.broadcast %3 : vector<64x1xf32> to vector<64x128xf32>
    %5 = arith.mulf %2, %4 : vector<64x128xf32>
    %6 = arith.truncf %5 : vector<64x128xf32> to vector<64x128xbf16>
    %c0_5 = arith.constant 0 : index
    %c0_6 = arith.constant 0 : index
    %7 = vector.load %arg4[%c0_5, %c0_6] : memref<64x128xbf16, #tpu.memory_space<vmem>>, vector<64x128xbf16>
    tpu.vector_store %arg4[%c0_5, %c0_6], %6 {strides = array<i32>} : memref<64x128xbf16, #tpu.memory_space<vmem>>, vector<64x128xbf16>,
    return
  }
  func.func @transform_0(%arg0: i32) -> (i32, i32) {
    %c0_i32 = arith.constant 0 : i32
    %c0_i32_0 = arith.constant 0 : i32
    return %arg0, %c0_i32 : i32, i32
  }
  func.func @transform_1(%arg0: i32) -> (i32, i32) {
    %c0_i32 = arith.constant 0 : i32
    %c0_i32_0 = arith.constant 0 : i32
    %c0_i32_1 = arith.constant 0 : i32
    return %c0_i32, %c0_i32_0 : i32, i32
  }
  func.func @transform_2(%arg0: i32) -> (i32, i32) {
    %c0_i32 = arith.constant 0 : i32
    %c0_i32_0 = arith.constant 0 : i32
    return %arg0, %c0_i32 : i32, i32
  }
  func.func @transform_3(%arg0: i32) -> (i32, i32) {
    %c0_i32 = arith.constant 0 : i32
    %c0_i32_0 = arith.constant 0 : i32
    return %arg0, %c0_i32 : i32, i32
  }
}

</mosaic_0001>

<llo_original>
// kernel: tpu_custom_call.1
$region0: #{tpu_custom_call.1}
  #allocation0 [shape = 'u32[]', space=smem, size = 0x4, offset = 0x4, fixed_abs, tag = 'smem constant byte address 0x4 - core index']
  #allocation1 [shape = 'u32[72,128]{1,0:T(1,128)}', space=vmem, size = 0x9000, scoped, tag = 'internal scratch']
  %s0 = inlined_call_operand.vmem [shape: bf16[64,32], index: 0, kind: input, shape index: {}]
  %s1 = inlined_call_operand.vmem [shape: bf16[32,128], index: 1, kind: input, shape index: {}]
  %s2 = inlined_call_operand.vmem [shape: f32[64,1], index: 2, kind: input, shape index: {}]
  %s3 = inlined_call_operand.hbm [shape: bf16[64,128], index: 3, kind: output, shape index: {}]
  %s4 = sld [smem:[#allocation0]]
  $region22: #{tpu_custom_call.1} parent=0
    _
  %s6 = ssub.s32 1, %s4
  %s7 = scalar_select 0, %s6, %s4
  $region1: #{tpu_custom_call.1} parent=0
    #allocation2 [shape = 'u8[16384]{0}', space=vmem, size = 0x4000, scoped, tag = 'output window, operand 0, single buffered']
    #allocation3 [shape = 's32[1]{0}', space=sflag, size = 0x4, scoped, tag = 'scoped memory for tpu_custom_call.1']
    %8 = vsyncpa [#allocation3], 0
    // Predicated region
    $region2: #{tpu_custom_call.1} parent=1 // pred_check
      _
    $region3: #{tpu_custom_call.1} parent=1 // pred_check_branch
      %10 = sbr.rel (0) target = $region5
    $region4: #{tpu_custom_call.1} parent=1 // pred_region
      _
    $region5: #{tpu_custom_call.1} parent=1 // pred_fallthru
      _
    // Predicated region
    $region6: #{tpu_custom_call.1} parent=1 // pred_check
      _
    $region7: #{tpu_custom_call.1} parent=1 // pred_check_branch
      %12 = sbr.rel (0) target = $region9
    $region8: #{tpu_custom_call.1} parent=1 // pred_region
      _
    $region9: #{tpu_custom_call.1} parent=1 // pred_fallthru
      _
    // Predicated region
    $region10: #{tpu_custom_call.1} parent=1 // pred_check
      _
    $region11: #{tpu_custom_call.1} parent=1 // pred_check_branch
      %14 = sbr.rel (0) target = $region13
    $region12: #{tpu_custom_call.1} parent=1 // pred_region
      _
    $region13: #{tpu_custom_call.1} parent=1 // pred_fallthru
      _
    %v16 = vld [vmem:[%s0] sm:$0xf]
    %v17 = vld [vmem:[%s0 + $0x4] sm:$0xf]
    %v18 = vld [vmem:[%s0 + $0x8] sm:$0xf]
    %v19 = vld [vmem:[%s0 + $0xc] sm:$0xf]
    %v20 = vld [vmem:[%s0 + $0x10] sm:$0xf]
    %v21 = vld [vmem:[%s0 + $0x14] sm:$0xf]
    %v22 = vld [vmem:[%s0 + $0x18] sm:$0xf]
    %v23 = vld [vmem:[%s0 + $0x1c] sm:$0xf]
    %v24 = vld [vmem:[%s1] sm:$0xf]
    %v25 = vld [vmem:[%s1 + $0x4] sm:$0xf]
    %v26 = vld [vmem:[%s1 + $0x8] sm:$0xf]
    %v27 = vld [vmem:[%s1 + $0xc] sm:$0xf]
    %v36 = vunpack.c.l.b16 %v16
    %v37 = vunpack.c.l.b16 %v17
    %v38 = vunpack.c.l.b16 %v18
    %v39 = vunpack.c.l.b16 %v19
    %v40 = vunpack.c.l.b16 %v20
    %v41 = vunpack.c.l.b16 %v21
    %v42 = vunpack.c.l.b16 %v22
    %v43 = vunpack.c.l.b16 %v23
    %v44 = vpack.c.b16 %v37, %v36
    %v45 = vpack.c.b16 %v39, %v38
    %v46 = vpack.c.b16 %v41, %v40
    %v47 = vpack.c.b16 %v43, %v42
    %v52 = vunpack.c.l.b16 %v24
    %v53 = vunpack.c.l.b16 %v25
    %v54 = vunpack.c.l.b16 %v26
    %v55 = vunpack.c.l.b16 %v27
    %v56 = vpack.c.b16 %v53, %v52
    %v57 = vpack.c.b16 %v55, %v54
    %vm60 = vcmask 261120
    %v62 = vsel %vm60, %v44, 0
    %v65 = vsel %vm60, %v45, 0
    %v68 = vsel %vm60, %v46, 0
    %v71 = vsel %vm60, %v47, 0
    %73 = vmatpush.bf16.msra.mxu0 0
    %74 = vmatpush.bf16.msra.mxu0 0
    %75 = vmatpush.bf16.msra.mxu0 0
    %76 = vmatpush.bf16.msra.mxu0 0
    %77 = vmatpush.bf16.msra.mxu0 0
    %78 = vmatpush.bf16.msra.mxu0 0
    %79 = vmatpush.bf16.msra.mxu0 %v57
    %80 = vmatpush.bf16.msra.mxu0 %v56
    %81 = vmatmul.bf16.gmra.mxu0 %v62
    %v82 = vpop.f32.mrf.mxu0
    %v83 = vadd.f32 0.0, %v82
    %v84 = vpop.f32.mrf.mxu0
    %v85 = vadd.f32 0.0, %v84
    %86 = vmatmul.bf16.gmra.mxu0 %v65
    %v87 = vpop.f32.mrf.mxu0
    %v88 = vadd.f32 0.0, %v87
    %v89 = vpop.f32.mrf.mxu0
    %v90 = vadd.f32 0.0, %v89
    %91 = vmatmul.bf16.gmra.mxu0 %v68
    %v92 = vpop.f32.mrf.mxu0
    %v93 = vadd.f32 0.0, %v92
    %v94 = vpop.f32.mrf.mxu0
    %v95 = vadd.f32 0.0, %v94
    %96 = vmatmul.bf16.gmra.mxu0 %v71
    %v97 = vpop.f32.mrf.mxu0
    %v98 = vadd.f32 0.0, %v97
    %v99 = vpop.f32.mrf.mxu0
    %v100 = vadd.f32 0.0, %v99
    %101 = vdwg.mxu0
    %v102 = vld [vmem:[%s2] sm:$0xff]
    %v103 = vld [vmem:[%s2 + $0x8] sm:$0xff]
    %v104 = vld [vmem:[%s2 + $0x10] sm:$0xff]
    %v105 = vld [vmem:[%s2 + $0x18] sm:$0xff]
    %v106 = vld [vmem:[%s2 + $0x20] sm:$0xff]
    %v107 = vld [vmem:[%s2 + $0x28] sm:$0xff]
    %v108 = vld [vmem:[%s2 + $0x30] sm:$0xff]
    %v109 = vld [vmem:[%s2 + $0x38] sm:$0xff]
    %111 = vset.pattern.permute.xlu0 0
    %112 = vperm.xlu0 %111, %v102
    %v113 = vpop.permute.xlu0 %112
    %116 = vset.pattern.permute.xlu0 0
    %117 = vperm.xlu0 %116, %v103
    %v118 = vpop.permute.xlu0 %117
    %121 = vset.pattern.permute.xlu0 0
    %122 = vperm.xlu0 %121, %v104
    %v123 = vpop.permute.xlu0 %122
    %126 = vset.pattern.permute.xlu0 0
    %127 = vperm.xlu0 %126, %v105
    %v128 = vpop.permute.xlu0 %127
    %131 = vset.pattern.permute.xlu0 0
    %132 = vperm.xlu0 %131, %v106
    %v133 = vpop.permute.xlu0 %132
    %136 = vset.pattern.permute.xlu0 0
    %137 = vperm.xlu0 %136, %v107
    %v138 = vpop.permute.xlu0 %137
    %141 = vset.pattern.permute.xlu0 0
    %142 = vperm.xlu0 %141, %v108
    %v143 = vpop.permute.xlu0 %142
    %146 = vset.pattern.permute.xlu0 0
    %147 = vperm.xlu0 %146, %v109
    %v148 = vpop.permute.xlu0 %147
    %v150 = vmul.f32 %v83, %v113
    %v151 = vmul.f32 %v85, %v118
    %v152 = vmul.f32 %v88, %v123
    %v153 = vmul.f32 %v90, %v128
    %v154 = vmul.f32 %v93, %v133
    %v155 = vmul.f32 %v95, %v138
    %v156 = vmul.f32 %v98, %v143
    %v157 = vmul.f32 %v100, %v148
    %v158 = vpack.c.bf16 %v150, %v150
    %v159 = vpack.c.bf16 %v151, %v151
    %v160 = vpack.c.bf16 %v152, %v152
    %v161 = vpack.c.bf16 %v153, %v153
    %v162 = vpack.c.bf16 %v154, %v154
    %v163 = vpack.c.bf16 %v155, %v155
    %v164 = vpack.c.bf16 %v156, %v156
    %v165 = vpack.c.bf16 %v157, %v157
    %166 = vst [vmem:[#allocation2] sm:$0xf] %v158
    %167 = vst [vmem:[#allocation2 + $0x4] sm:$0xf] %v159
    %168 = vst [vmem:[#allocation2 + $0x8] sm:$0xf] %v160
    %169 = vst [vmem:[#allocation2 + $0xc] sm:$0xf] %v161
    %170 = vst [vmem:[#allocation2 + $0x10] sm:$0xf] %v162
    %171 = vst [vmem:[#allocation2 + $0x14] sm:$0xf] %v163
    %172 = vst [vmem:[#allocation2 + $0x18] sm:$0xf] %v164
    %173 = vst [vmem:[#allocation2 + $0x1c] sm:$0xf] %v165
    // Predicated region
    $region14: #{tpu_custom_call.1} parent=1 // pred_check
      _
    $region15: #{tpu_custom_call.1} parent=1 // pred_check_branch
      %175 = sbr.rel (0) target = $region17
    $region16: #{tpu_custom_call.1} parent=1 // pred_region
      %177 = vsyncadd [#allocation3], 0
      %s178 = sshll.u32 [#allocation2], 4
      %s179 = int_to_ptr.vmem [resolvable:$true] %s178
      %s180 = sshll.u32 %s3, 4
      %s181 = int_to_ptr.hbm [resolvable:$true] %s180
      %186 = dma.vmem_to_hbm [thread:$0]  %s179, 512, %s181, [#allocation3], 64, 64, 4
    $region17: #{tpu_custom_call.1} parent=1 // pred_fallthru
      _
    // Predicated region
    $region18: #{tpu_custom_call.1} parent=1 // pred_check
      _
    $region19: #{tpu_custom_call.1} parent=1 // pred_check_branch
      %188 = sbr.rel (0) target = $region21
    $region20: #{tpu_custom_call.1} parent=1 // pred_region
      %190 = dma.done [#allocation3], 512
    $region21: #{tpu_custom_call.1} parent=1 // pred_fallthru
      _
    %191 = vsyncpa [#allocation3], 1

</llo_original>
